<compile_context>
chip_gen: v7x
topology: tpu7x:2x2x1
jax: 0.10.0
libtpu: 0.0.40
codegen_flags: <defaults>
</compile_context>

<pallas_src>
import jax
import jax.numpy as jnp
from jax.experimental import pallas as pl
from jax.experimental.pallas import tpu as pltpu

IN_F, H1, H2, OUT_F = 13, 26, 26, 3
K_PAD = 16        # input features padded to 16 (full-dim block; ~8x less read than 128)
LANE = 128        # hidden width padded to one lane extent
OUT_PAD = 8       # lane-trimmed output width (3 useful lanes)
TILE_B_MAX = 512  # batch tile for the grid (bounds VMEM, feeds the 256-wide MXU)


def _mlp_kernel(x_ref, w1_ref, w2_ref, w3_ref, b_ref, o_ref):
    # x_ref : (TB, 16)   bf16       w1_ref: (16, 128)  bf16
    # w2_ref: (128, 128) bf16       w3_ref: (128, 8)   bf16
    # b_ref : (3, 128)   f32  (rows: b1, b2, b3-padded)
    # o_ref : (TB, 8)    f32
    h = jnp.dot(x_ref[...], w1_ref[...], preferred_element_type=jnp.float32)
    h = jnp.maximum(h + b_ref[0:1, :], 0.0)                      # fc1 + ReLU
    h = jnp.dot(h.astype(jnp.bfloat16), w2_ref[...],
                preferred_element_type=jnp.float32)
    h = jnp.maximum(h + b_ref[1:2, :], 0.0)                      # fc2 + ReLU
    o = jnp.dot(h.astype(jnp.bfloat16), w3_ref[...],
                preferred_element_type=jnp.float32)
    o_ref[...] = o + b_ref[2:3, :OUT_PAD]                        # fc3 (no act)


def prepare_params(params):
    """One-time prep: transpose PyTorch (out,in) weights to (in,out),
    zero-pad to MXU-friendly shapes, cast weights to bf16. Call once."""
    w1 = jnp.zeros((K_PAD, LANE), jnp.float32).at[:IN_F, :H1].set(params["w1"].T)
    w2 = jnp.zeros((LANE, LANE), jnp.float32).at[:H1, :H2].set(params["w2"].T)
    w3 = jnp.zeros((LANE, OUT_PAD), jnp.float32).at[:H2, :OUT_F].set(params["w3"].T)
    b = (jnp.zeros((3, LANE), jnp.float32)
         .at[0, :H1].set(params["b1"])
         .at[1, :H2].set(params["b2"])
         .at[2, :OUT_F].set(params["b3"]))
    return {
        "w1": w1.astype(jnp.bfloat16),
        "w2": w2.astype(jnp.bfloat16),
        "w3": w3.astype(jnp.bfloat16),
        "b": b,  # biases stay f32; added on the f32 accumulators
    }


def _mlp_pallas(xp, prep, tile_b):
    Bp = xp.shape[0]
    const = lambda i: (0, 0)  # weights/biases: same block every step -> stay resident
    return pl.pallas_call(
        _mlp_kernel,
        out_shape=jax.ShapeDtypeStruct((Bp, OUT_PAD), jnp.float32),
        grid_spec=pltpu.PrefetchScalarGridSpec(
            num_scalar_prefetch=0,
            grid=(Bp // tile_b,),
            in_specs=[
                pl.BlockSpec((tile_b, K_PAD), lambda i: (i, 0)),   # x tile
                pl.BlockSpec((K_PAD, LANE), const),                # w1
                pl.BlockSpec((LANE, LANE), const),                 # w2
                pl.BlockSpec((LANE, OUT_PAD), const),              # w3
                pl.BlockSpec((3, LANE), const),                    # biases
            ],
            out_specs=pl.BlockSpec((tile_b, OUT_PAD), lambda i: (i, 0)),
        ),
        compiler_params=pltpu.CompilerParams(
            dimension_semantics=("parallel",),
        ),
    )(xp, prep["w1"], prep["w2"], prep["w3"], prep["b"])


def net_forward(x, prep):
    """x: (B, 13) float32 -> (B, 3) float32 (same semantics as the PyTorch Net)."""
    B = x.shape[0]
    if B <= TILE_B_MAX:
        tile_b = max(8, ((B + 7) // 8) * 8)
    else:
        tile_b = TILE_B_MAX
    Bp = ((B + tile_b - 1) // tile_b) * tile_b

    xp = jnp.zeros((Bp, K_PAD), jnp.bfloat16).at[:B, :IN_F].set(
        x.astype(jnp.bfloat16))
    out = _mlp_pallas(xp, prep, tile_b)
    return out[:B, :OUT_F]


net_forward = jax.jit(net_forward)


def init_params(key):
    """Deterministic init with the same shapes/distribution as the PyTorch module."""
    ks = jax.random.split(key, 6)

    def uniform(k, shape, fan_in):
        bound = 1.0 / jnp.sqrt(fan_in)
        return jax.random.uniform(k, shape, jnp.float32, -bound, bound)

    return {
        "w1": uniform(ks[0], (H1, IN_F), IN_F),
        "b1": uniform(ks[1], (H1,), IN_F),
        "w2": uniform(ks[2], (H2, H1), H1),
        "b2": uniform(ks[3], (H2,), H1),
        "w3": uniform(ks[4], (OUT_F, H2), H2),
        "b3": uniform(ks[5], (OUT_F,), H2),
    }


def reference_forward(x, p):
    h = jnp.maximum(x @ p["w1"].T + p["b1"], 0.0)
    h = jnp.maximum(h @ p["w2"].T + p["b2"], 0.0)
    return h @ p["w3"].T + p["b3"]


if __name__ == "__main__":
    key = jax.random.PRNGKey(0)
    pkey, xkey = jax.random.split(key)
    params = init_params(pkey)
    prep = prepare_params(params)          # one-time weight prep (hoisted out of hot path)

    B = 8  # small batch of wine samples, each with 13 features
    x = jax.random.normal(xkey, (B, IN_F), jnp.float32)

    out = net_forward(x, prep)
    out = jax.block_until_ready(out)

    ref = reference_forward(x, params)     # f32 reference of the PyTorch module
    assert out.shape == (B, OUT_F)
    # bf16 matmuls with f32 accumulation: loosen tolerance vs. the f32 reference.
    assert jnp.allclose(out, ref, atol=3e-2, rtol=3e-2), float(jnp.max(jnp.abs(out - ref)))
    print("KERNEL_OK")
</pallas_src>

<mosaic_0001>
module attributes {stable_mosaic.version = 11 : i64} {
  func.func @_mlp_kernel(%arg0: i32, %arg1: memref<8x16xbf16, #tpu.memory_space<vmem>>, %arg2: memref<16x128xbf16, #tpu.memory_space<vmem>>, %arg3: memref<128x128xbf16, #tpu.memory_space<vmem>>, %arg4: memref<128x8xbf16, #tpu.memory_space<vmem>>, %arg5: memref<3x128xf32, #tpu.memory_space<vmem>>, %arg6: memref<8x8xf32, #tpu.memory_space<vmem>>) attributes {dimension_semantics = [#tpu.dimension_semantics<parallel>], iteration_bounds = array<i64: 1>, scalar_prefetch = 0 : i64, scratch_operands = 0 : i64, tpu.core_type = #tpu.core_type<tc>, window_params = [{transform_indices = @transform_0, window_bounds = array<i64: 8, 16>}, {pipeline_mode = #tpu.pipeline_mode<synchronous>, transform_indices = @transform_1, window_bounds = array<i64: 16, 128>}, {pipeline_mode = #tpu.pipeline_mode<synchronous>, transform_indices = @transform_2, window_bounds = array<i64: 128, 128>}, {pipeline_mode = #tpu.pipeline_mode<synchronous>, transform_indices = @transform_3, window_bounds = array<i64: 128, 8>}, {pipeline_mode = #tpu.pipeline_mode<synchronous>, transform_indices = @transform_4, window_bounds = array<i64: 3, 128>}, {transform_indices = @transform_5, window_bounds = array<i64: 8, 8>}]} {
    %c0 = arith.constant 0 : index
    %c0_0 = arith.constant 0 : index
    %0 = vector.load %arg1[%c0, %c0_0] : memref<8x16xbf16, #tpu.memory_space<vmem>>, vector<8x16xbf16>
    %c0_1 = arith.constant 0 : index
    %c0_2 = arith.constant 0 : index
    %1 = vector.load %arg2[%c0_1, %c0_2] : memref<16x128xbf16, #tpu.memory_space<vmem>>, vector<16x128xbf16>
    %cst = arith.constant dense<0.000000e+00> : vector<8x128xf32>
    %2 = tpu.matmul %0, %1, %cst {dimension_numbers = #tpu.dot_dimension_numbers<[1], [0], [0], [1], [0, 0, 1, 1], [], []>} : vector<8x16xbf16>, vector<16x128xbf16>, vector<8x128xf32> -> vector<8x128xf32>
    %c0_3 = arith.constant 0 : index
    %c0_4 = arith.constant 0 : index
    %3 = vector.load %arg5[%c0_3, %c0_4] : memref<3x128xf32, #tpu.memory_space<vmem>>, vector<1x128xf32>
    %4 = vector.broadcast %3 : vector<1x128xf32> to vector<8x128xf32>
    %5 = arith.addf %2, %4 : vector<8x128xf32>
    %cst_5 = arith.constant 0.000000e+00 : f32
    %6 = vector.broadcast %cst_5 : f32 to vector<8x128xf32>
    %7 = arith.maximumf %5, %6 : vector<8x128xf32>
    %8 = arith.truncf %7 : vector<8x128xf32> to vector<8x128xbf16>
    %c0_6 = arith.constant 0 : index
    %c0_7 = arith.constant 0 : index
    %9 = vector.load %arg3[%c0_6, %c0_7] : memref<128x128xbf16, #tpu.memory_space<vmem>>, vector<128x128xbf16>
    %cst_8 = arith.constant dense<0.000000e+00> : vector<8x128xf32>
    %10 = tpu.matmul %8, %9, %cst_8 {dimension_numbers = #tpu.dot_dimension_numbers<[1], [0], [0], [1], [0, 0, 1, 1], [], []>} : vector<8x128xbf16>, vector<128x128xbf16>, vector<8x128xf32> -> vector<8x128xf32>
    %c1 = arith.constant 1 : index
    %c0_9 = arith.constant 0 : index
    %11 = vector.load %arg5[%c1, %c0_9] : memref<3x128xf32, #tpu.memory_space<vmem>>, vector<1x128xf32>
    %12 = vector.broadcast %11 : vector<1x128xf32> to vector<8x128xf32>
    %13 = arith.addf %10, %12 : vector<8x128xf32>
    %cst_10 = arith.constant 0.000000e+00 : f32
    %14 = vector.broadcast %cst_10 : f32 to vector<8x128xf32>
    %15 = arith.maximumf %13, %14 : vector<8x128xf32>
    %16 = arith.truncf %15 : vector<8x128xf32> to vector<8x128xbf16>
    %c0_11 = arith.constant 0 : index
    %c0_12 = arith.constant 0 : index
    %17 = vector.load %arg4[%c0_11, %c0_12] : memref<128x8xbf16, #tpu.memory_space<vmem>>, vector<128x8xbf16>
    %cst_13 = arith.constant dense<0.000000e+00> : vector<8x8xf32>
    %18 = tpu.matmul %16, %17, %cst_13 {dimension_numbers = #tpu.dot_dimension_numbers<[1], [0], [0], [1], [0, 0, 1, 1], [], []>} : vector<8x128xbf16>, vector<128x8xbf16>, vector<8x8xf32> -> vector<8x8xf32>
    %c2 = arith.constant 2 : index
    %c0_14 = arith.constant 0 : index
    %19 = vector.load %arg5[%c2, %c0_14] : memref<3x128xf32, #tpu.memory_space<vmem>>, vector<1x8xf32>
    %20 = vector.broadcast %19 : vector<1x8xf32> to vector<8x8xf32>
    %21 = arith.addf %18, %20 : vector<8x8xf32>
    %c0_15 = arith.constant 0 : index
    %c0_16 = arith.constant 0 : index
    %22 = vector.load %arg6[%c0_15, %c0_16] : memref<8x8xf32, #tpu.memory_space<vmem>>, vector<8x8xf32>
    tpu.vector_store %arg6[%c0_15, %c0_16], %21 {strides = array<i32>} : memref<8x8xf32, #tpu.memory_space<vmem>>, vector<8x8xf32>,
    return
  }
  func.func @transform_0(%arg0: i32) -> (i32, i32) {
    %c0_i32 = arith.constant 0 : i32
    %c0_i32_0 = arith.constant 0 : i32
    return %arg0, %c0_i32 : i32, i32
  }
  func.func @transform_1(%arg0: i32) -> (i32, i32) {
    %c0_i32 = arith.constant 0 : i32
    %c0_i32_0 = arith.constant 0 : i32
    %c0_i32_1 = arith.constant 0 : i32
    return %c0_i32, %c0_i32_0 : i32, i32
  }
  func.func @transform_2(%arg0: i32) -> (i32, i32) {
    %c0_i32 = arith.constant 0 : i32
    %c0_i32_0 = arith.constant 0 : i32
    %c0_i32_1 = arith.constant 0 : i32
    return %c0_i32, %c0_i32_0 : i32, i32
  }
  func.func @transform_3(%arg0: i32) -> (i32, i32) {
    %c0_i32 = arith.constant 0 : i32
    %c0_i32_0 = arith.constant 0 : i32
    %c0_i32_1 = arith.constant 0 : i32
    return %c0_i32, %c0_i32_0 : i32, i32
  }
  func.func @transform_4(%arg0: i32) -> (i32, i32) {
    %c0_i32 = arith.constant 0 : i32
    %c0_i32_0 = arith.constant 0 : i32
    %c0_i32_1 = arith.constant 0 : i32
    return %c0_i32, %c0_i32_0 : i32, i32
  }
  func.func @transform_5(%arg0: i32) -> (i32, i32) {
    %c0_i32 = arith.constant 0 : i32
    %c0_i32_0 = arith.constant 0 : i32
    return %arg0, %c0_i32 : i32, i32
  }
}

</mosaic_0001>

<llo_original>
// kernel: net_forward.1
$region0: #{net_forward.1}
  #allocation0 [shape = 'u32[]', space=smem, size = 0x4, offset = 0x4, fixed_abs, tag = 'smem constant byte address 0x4 - core index']
  #allocation1 [shape = 'u32[144,128]{1,0:T(1,128)}', space=vmem, size = 0x12000, scoped, tag = 'internal scratch']
  %s0 = inlined_call_operand.vmem [shape: bf16[8,16], index: 0, kind: input, shape index: {}]
  %s1 = inlined_call_operand.vmem [shape: bf16[16,128], index: 1, kind: input, shape index: {}]
  %s2 = inlined_call_operand.vmem [shape: bf16[128,128], index: 2, kind: input, shape index: {}]
  %s3 = inlined_call_operand.vmem [shape: bf16[128,8], index: 3, kind: input, shape index: {}]
  %s4 = inlined_call_operand.vmem [shape: f32[3,128], index: 4, kind: input, shape index: {}]
  %s5 = inlined_call_operand.vmem [shape: f32[8,8], index: 5, kind: output, shape index: {}]
  %s6 = sld [smem:[#allocation0]]
  $region30: #{net_forward.1} parent=0
    _
  %s8 = ssub.s32 1, %s6
  %s9 = scalar_select 0, %s8, %s6
  // Predicated region
  $region2: #{net_forward.1} parent=0 // pred_check
    _
  $region3: #{net_forward.1} parent=0 // pred_check_branch
    %11 = sbr.rel (0) target = $region5
  $region4: #{net_forward.1} parent=0 // pred_region
    _
  $region5: #{net_forward.1} parent=0 // pred_fallthru
    _
  // Predicated region
  $region6: #{net_forward.1} parent=0 // pred_check
    _
  $region7: #{net_forward.1} parent=0 // pred_check_branch
    %13 = sbr.rel (0) target = $region9
  $region8: #{net_forward.1} parent=0 // pred_region
    _
  $region9: #{net_forward.1} parent=0 // pred_fallthru
    _
  // Predicated region
  $region10: #{net_forward.1} parent=0 // pred_check
    _
  $region11: #{net_forward.1} parent=0 // pred_check_branch
    %15 = sbr.rel (0) target = $region13
  $region12: #{net_forward.1} parent=0 // pred_region
    _
  $region13: #{net_forward.1} parent=0 // pred_fallthru
    _
  // Predicated region
  $region14: #{net_forward.1} parent=0 // pred_check
    _
  $region15: #{net_forward.1} parent=0 // pred_check_branch
    %17 = sbr.rel (0) target = $region17
  $region16: #{net_forward.1} parent=0 // pred_region
    _
  $region17: #{net_forward.1} parent=0 // pred_fallthru
    _
  // Predicated region
  $region18: #{net_forward.1} parent=0 // pred_check
    _
  $region19: #{net_forward.1} parent=0 // pred_check_branch
    %19 = sbr.rel (0) target = $region21
  $region20: #{net_forward.1} parent=0 // pred_region
    _
  $region21: #{net_forward.1} parent=0 // pred_fallthru
    _
  %v21 = vld [vmem:[%s0] sm:$0xf]
  %v22 = vld [vmem:[%s1] sm:$0xf]
  %v23 = vld [vmem:[%s1 + $0x4] sm:$0xf]
  %v24 = vld [vmem:[%s4] sm:$0x1]
  %v25 = vlaneseq
  %v26 = vshrl.u32 %v25, 7
  %v27 = vsub.s32 0, %v26
  %v28 = vrot.slane %v24, %v27
  %v31 = vunpack.c.l.b16 %v22
  %v32 = vunpack.c.l.b16 %v23
  %v33 = vpack.c.b16 %v32, %v31
  %vm35 = vcmask 130048
  %v37 = vsel %vm35, %v21, 0
  %39 = vmatprep.subr.bf16.mxu0 0
  %40 = vmatpush1.bf16.msra.mxu0 %v33
  %41 = vmatprep.subr.bf16.mxu0 0
  %42 = vmatpush1.bf16.msra.mxu0 0
  %43 = vmatprep.subr.bf16.mxu0 0
  %44 = vmatpush1.bf16.msra.mxu0 0
  %45 = vmatprep.subr.bf16.mxu0 0
  %46 = vmatpush1.bf16.msra.mxu0 0
  %47 = vmatprep.subr.bf16.mxu0 0
  %48 = vmatpush1.bf16.msra.mxu0 0
  %49 = vmatprep.subr.bf16.mxu0 0
  %50 = vmatpush1.bf16.msra.mxu0 0
  %51 = vmatprep.subr.bf16.mxu0 0
  %52 = vmatpush1.bf16.msra.mxu0 0
  %53 = vmatprep.subr.bf16.mxu0 0
  %54 = vmatpush1.bf16.msra.mxu0 0
  %55 = vmatprep.subr.bf16.mxu0 0
  %56 = vmatpush1.bf16.msra.mxu0 0
  %57 = vmatprep.subr.bf16.mxu0 0
  %58 = vmatpush1.bf16.msra.mxu0 0
  %59 = vmatprep.subr.bf16.mxu0 0
  %60 = vmatpush1.bf16.msra.mxu0 0
  %61 = vmatprep.subr.bf16.mxu0 0
  %62 = vmatpush1.bf16.msra.mxu0 0
  %63 = vmatprep.subr.bf16.mxu0 0
  %64 = vmatpush1.bf16.msra.mxu0 0
  %65 = vmatprep.subr.bf16.mxu0 0
  %66 = vmatpush1.bf16.msra.mxu0 0
  %67 = vmatprep.subr.bf16.mxu0 0
  %68 = vmatpush1.bf16.msra.mxu0 0
  %69 = vmatprep.subr.bf16.mxu0 0
  %70 = vmatpush1.bf16.msra.mxu0 0
  %71 = vmatprep.mubr.bf16.mxu0 0
  %72 = vmatmul.mubr.bf16.gmra.mrb[0].mxu0 %v37
  %v73 = vpop.f32.mrb[0].mxu0
  %v74 = vadd.f32 %v28, %v73
  %v75 = vpop.f32.mrb[0].mxu0
  %v76 = vpop.f32.mrb[0].mxu0
  %v77 = vpop.f32.mrb[0].mxu0
  %78 = vdwg.mxu0
  %v79 = vmax.f32 %v74, 0.0
  %v80 = vpack.c.bf16 %v79, %v79
  %v81 = vld [vmem:[%s2] sm:$0xf]
  %v82 = vld [vmem:[%s2 + $0x4] sm:$0xf]
  %v83 = vld [vmem:[%s2 + $0x8] sm:$0xf]
  %v84 = vld [vmem:[%s2 + $0xc] sm:$0xf]
  %v85 = vld [vmem:[%s2 + $0x10] sm:$0xf]
  %v86 = vld [vmem:[%s2 + $0x14] sm:$0xf]
  %v87 = vld [vmem:[%s2 + $0x18] sm:$0xf]
  %v88 = vld [vmem:[%s2 + $0x1c] sm:$0xf]
  %v89 = vld [vmem:[%s2 + $0x20] sm:$0xf]
  %v90 = vld [vmem:[%s2 + $0x24] sm:$0xf]
  %v91 = vld [vmem:[%s2 + $0x28] sm:$0xf]
  %v92 = vld [vmem:[%s2 + $0x2c] sm:$0xf]
  %v93 = vld [vmem:[%s2 + $0x30] sm:$0xf]
  %v94 = vld [vmem:[%s2 + $0x34] sm:$0xf]
  %v95 = vld [vmem:[%s2 + $0x38] sm:$0xf]
  %v96 = vld [vmem:[%s2 + $0x3c] sm:$0xf]
  %v97 = vld [vmem:[%s4 + $0x1] sm:$0x1]
  %v98 = vlaneseq
  %v99 = vshrl.u32 %v98, 7
  %v100 = vsub.s32 0, %v99
  %v101 = vrot.slane %v97, %v100
  %v118 = vunpack.c.l.b16 %v81
  %v119 = vunpack.c.l.b16 %v82
  %v120 = vunpack.c.l.b16 %v83
  %v121 = vunpack.c.l.b16 %v84
  %v122 = vunpack.c.l.b16 %v85
  %v123 = vunpack.c.l.b16 %v86
  %v124 = vunpack.c.l.b16 %v87
  %v125 = vunpack.c.l.b16 %v88
  %v126 = vunpack.c.l.b16 %v89
  %v127 = vunpack.c.l.b16 %v90
  %v128 = vunpack.c.l.b16 %v91
  %v129 = vunpack.c.l.b16 %v92
  %v130 = vunpack.c.l.b16 %v93
  %v131 = vunpack.c.l.b16 %v94
  %v132 = vunpack.c.l.b16 %v95
  %v133 = vunpack.c.l.b16 %v96
  %v134 = vpack.c.b16 %v119, %v118
  %v135 = vpack.c.b16 %v121, %v120
  %v136 = vpack.c.b16 %v123, %v122
  %v137 = vpack.c.b16 %v125, %v124
  %v138 = vpack.c.b16 %v127, %v126
  %v139 = vpack.c.b16 %v129, %v128
  %v140 = vpack.c.b16 %v131, %v130
  %v141 = vpack.c.b16 %v133, %v132
  %150 = vmatprep.subr.bf16.mxu0 0
  %151 = vmatpush1.bf16.msra.mxu0 %v134
  %152 = vmatprep.subr.bf16.mxu0 0
  %153 = vmatpush1.bf16.msra.mxu0 %v135
  %154 = vmatprep.subr.bf16.mxu0 0
  %155 = vmatpush1.bf16.msra.mxu0 %v136
  %156 = vmatprep.subr.bf16.mxu0 0
  %157 = vmatpush1.bf16.msra.mxu0 %v137
  %158 = vmatprep.subr.bf16.mxu0 0
  %159 = vmatpush1.bf16.msra.mxu0 %v138
  %160 = vmatprep.subr.bf16.mxu0 0
  %161 = vmatpush1.bf16.msra.mxu0 %v139
  %162 = vmatprep.subr.bf16.mxu0 0
  %163 = vmatpush1.bf16.msra.mxu0 %v140
  %164 = vmatprep.subr.bf16.mxu0 0
  %165 = vmatpush1.bf16.msra.mxu0 %v141
  %166 = vmatprep.subr.bf16.mxu0 0
  %167 = vmatpush1.bf16.msra.mxu0 0
  %168 = vmatprep.subr.bf16.mxu0 0
  %169 = vmatpush1.bf16.msra.mxu0 0
  %170 = vmatprep.subr.bf16.mxu0 0
  %171 = vmatpush1.bf16.msra.mxu0 0
  %172 = vmatprep.subr.bf16.mxu0 0
  %173 = vmatpush1.bf16.msra.mxu0 0
  %174 = vmatprep.subr.bf16.mxu0 0
  %175 = vmatpush1.bf16.msra.mxu0 0
  %176 = vmatprep.subr.bf16.mxu0 0
  %177 = vmatpush1.bf16.msra.mxu0 0
  %178 = vmatprep.subr.bf16.mxu0 0
  %179 = vmatpush1.bf16.msra.mxu0 0
  %180 = vmatprep.subr.bf16.mxu0 0
  %181 = vmatpush1.bf16.msra.mxu0 0
  %182 = vmatprep.mubr.bf16.mxu0 0
  %183 = vmatmul.mubr.bf16.gmra.mrb[0].mxu0 %v80
  %v184 = vpop.f32.mrb[0].mxu0
  %v185 = vadd.f32 %v101, %v184
  %v186 = vpop.f32.mrb[0].mxu0
  %v187 = vpop.f32.mrb[0].mxu0
  %v188 = vpop.f32.mrb[0].mxu0
  %189 = vdwg.mxu0
  %v190 = vmax.f32 %v185, 0.0
  %v191 = vpack.c.bf16 %v190, %v190
  %v192 = vld [vmem:[%s3] sm:$0xf]
  %v193 = vld [vmem:[%s3 + $0x4] sm:$0xf]
  %v194 = vld [vmem:[%s3 + $0x8] sm:$0xf]
  %v195 = vld [vmem:[%s3 + $0xc] sm:$0xf]
  %v196 = vld [vmem:[%s3 + $0x10] sm:$0xf]
  %v197 = vld [vmem:[%s3 + $0x14] sm:$0xf]
  %v198 = vld [vmem:[%s3 + $0x18] sm:$0xf]
  %v199 = vld [vmem:[%s3 + $0x1c] sm:$0xf]
  %v200 = vld [vmem:[%s3 + $0x20] sm:$0xf]
  %v201 = vld [vmem:[%s3 + $0x24] sm:$0xf]
  %v202 = vld [vmem:[%s3 + $0x28] sm:$0xf]
  %v203 = vld [vmem:[%s3 + $0x2c] sm:$0xf]
  %v204 = vld [vmem:[%s3 + $0x30] sm:$0xf]
  %v205 = vld [vmem:[%s3 + $0x34] sm:$0xf]
  %v206 = vld [vmem:[%s3 + $0x38] sm:$0xf]
  %v207 = vld [vmem:[%s3 + $0x3c] sm:$0xf]
  %v208 = vld [vmem:[%s4 + $0x2] sm:$0x1]
  %v209 = vlaneseq
  %v210 = vshrl.u32 %v209, 7
  %v211 = vsub.s32 0, %v210
  %v212 = vrot.slane %v208, %v211
  %v229 = vunpack.c.l.b16 %v192
  %v230 = vunpack.c.l.b16 %v193
  %v231 = vunpack.c.l.b16 %v194
  %v232 = vunpack.c.l.b16 %v195
  %v233 = vunpack.c.l.b16 %v196
  %v234 = vunpack.c.l.b16 %v197
  %v235 = vunpack.c.l.b16 %v198
  %v236 = vunpack.c.l.b16 %v199
  %v237 = vunpack.c.l.b16 %v200
  %v238 = vunpack.c.l.b16 %v201
  %v239 = vunpack.c.l.b16 %v202
  %v240 = vunpack.c.l.b16 %v203
  %v241 = vunpack.c.l.b16 %v204
  %v242 = vunpack.c.l.b16 %v205
  %v243 = vunpack.c.l.b16 %v206
  %v244 = vunpack.c.l.b16 %v207
  %v245 = vpack.c.b16 %v230, %v229
  %v246 = vpack.c.b16 %v232, %v231
  %v247 = vpack.c.b16 %v234, %v233
  %v248 = vpack.c.b16 %v236, %v235
  %v249 = vpack.c.b16 %v238, %v237
  %v250 = vpack.c.b16 %v240, %v239
  %v251 = vpack.c.b16 %v242, %v241
  %v252 = vpack.c.b16 %v244, %v243
  %261 = vmatprep.subr.bf16.mxu0 0
  %262 = vmatpush1.bf16.msra.mxu0 %v245
  %263 = vmatprep.subr.bf16.mxu0 0
  %264 = vmatpush1.bf16.msra.mxu0 %v246
  %265 = vmatprep.subr.bf16.mxu0 0
  %266 = vmatpush1.bf16.msra.mxu0 %v247
  %267 = vmatprep.subr.bf16.mxu0 0
  %268 = vmatpush1.bf16.msra.mxu0 %v248
  %269 = vmatprep.subr.bf16.mxu0 0
  %270 = vmatpush1.bf16.msra.mxu0 %v249
  %271 = vmatprep.subr.bf16.mxu0 0
  %272 = vmatpush1.bf16.msra.mxu0 %v250
  %273 = vmatprep.subr.bf16.mxu0 0
  %274 = vmatpush1.bf16.msra.mxu0 %v251
  %275 = vmatprep.subr.bf16.mxu0 0
  %276 = vmatpush1.bf16.msra.mxu0 %v252
  %277 = vmatprep.subr.bf16.mxu0 0
  %278 = vmatpush1.bf16.msra.mxu0 0
  %279 = vmatprep.subr.bf16.mxu0 0
  %280 = vmatpush1.bf16.msra.mxu0 0
  %281 = vmatprep.subr.bf16.mxu0 0
  %282 = vmatpush1.bf16.msra.mxu0 0
  %283 = vmatprep.subr.bf16.mxu0 0
  %284 = vmatpush1.bf16.msra.mxu0 0
  %285 = vmatprep.subr.bf16.mxu0 0
  %286 = vmatpush1.bf16.msra.mxu0 0
  %287 = vmatprep.subr.bf16.mxu0 0
  %288 = vmatpush1.bf16.msra.mxu0 0
  %289 = vmatprep.subr.bf16.mxu0 0
  %290 = vmatpush1.bf16.msra.mxu0 0
  %291 = vmatprep.subr.bf16.mxu0 0
  %292 = vmatpush1.bf16.msra.mxu0 0
  %293 = vmatprep.mubr.bf16.mxu0 0
  %294 = vmatmul.mubr.bf16.gmra.mrb[0].mxu0 %v191
  %v295 = vpop.f32.mrb[0].mxu0
  %v296 = vadd.f32 %v212, %v295
  %v297 = vpop.f32.mrb[0].mxu0
  %v298 = vpop.f32.mrb[0].mxu0
  %v299 = vpop.f32.mrb[0].mxu0
  %300 = vdwg.mxu0
  %vm301 = vcmask 64512
  %302 = vst.msk [vmem:[%s5] sm:$0xff] %vm301, %v296
  // Predicated region
  $region22: #{net_forward.1} parent=0 // pred_check
    _
  $region23: #{net_forward.1} parent=0 // pred_check_branch
    %304 = sbr.rel (0) target = $region25
  $region24: #{net_forward.1} parent=0 // pred_region
    _
  $region25: #{net_forward.1} parent=0 // pred_fallthru
    _
  // Predicated region
  $region26: #{net_forward.1} parent=0 // pred_check
    _
  $region27: #{net_forward.1} parent=0 // pred_check_branch
    %306 = sbr.rel (0) target = $region29
  $region28: #{net_forward.1} parent=0 // pred_region
    _
  $region29: #{net_forward.1} parent=0 // pred_fallthru
    _

</llo_original>
